<compile_context>
chip_gen: v7x
topology: tpu7x:2x2x1
jax: 0.10.0
libtpu: 0.0.40
codegen_flags: <defaults>
</compile_context>

<pallas_src>
import functools

import jax
import jax.numpy as jnp
from jax.experimental import pallas as pl
from jax.experimental.pallas import tpu as pltpu


def _round_up(n, m):
    return ((n + m - 1) // m) * m


def _physical_vmem_bytes():
    """Best-effort physical VMEM query with a v7x-safe fallback."""
    try:
        return int(pltpu.get_tpu_info().vmem_capacity_bytes)
    except Exception:
        pass
    try:
        dk = jax.devices()[0].device_kind.lower()
        return (64 << 20) if "v7" in dk else (128 << 20)
    except Exception:
        return 64 << 20          # conservative: safe on every generation


def _bf16_vpu_ok():
    """v6e/v7x VALUs are bf16-capable; v5e (and older) are not."""
    try:
        dk = jax.devices()[0].device_kind.lower()
        return ("v6" in dk) or ("v7" in dk)
    except Exception:
        return False


_PHYS_VMEM = _physical_vmem_bytes()
_BF16_EPILOGUE = _bf16_vpu_ok()


def _autoencoder_kernel(
    act_dtype,
    x_ref,
    # 7 fused linear layers (weights bf16; biases in act_dtype, b8 in f32)
    w1, b1, w2, b2, w3, b3, w45, b45, w6, b6, w7, b7, w8, b8,
    out_ref,
):
    f32 = jnp.float32
    bf16 = jnp.bfloat16

    def layer(h, w_ref, b_ref):
        # bf16 MXU operands, f32 accumulation; bias add + ReLU in act_dtype
        # (bf16 on v6e/v7x -> 2x VALU rate + no per-layer cast, f32 on v5e).
        acc = jnp.dot(h.astype(bf16), w_ref[...], preferred_element_type=f32)
        return jnp.maximum(acc.astype(act_dtype) + b_ref[...], 0)

    h = x_ref[...]

    # ---- encoder ----
    h = layer(h, w1, b1)
    h = layer(h, w2, b2)
    h = layer(h, w3, b3)
    # fused bottleneck Linear(16,rd) o Linear(rd,16) + decoder's first ReLU
    h = layer(h, w45, b45)
    # ---- decoder ----
    h = layer(h, w6, b6)
    h = layer(h, w7, b7)
    # final layer computed in f32, sigmoid as a single EUP tanh pass
    z = jnp.dot(h.astype(bf16), w8[...], preferred_element_type=f32) + b8[...]
    out_ref[...] = (0.5 * jnp.tanh(0.5 * z) + 0.5).astype(out_ref.dtype)


def _prepare_kernel_params(params, out_pad, act_dtype):
    """Fuse the activation-free bottleneck pair, pad the final layer to a
    lane-dense width, and cast weights to bf16 (biases to act_dtype, b8 f32)."""
    (w1, b1, w2, b2, w3, b3, w4, b4,
     w5, b5, w6, b6, w7, b7, w8, b8) = params

    # Linear(16->reduced_dim) followed immediately by Linear(reduced_dim->16),
    # fused in f32 before any casting.
    w45 = w4 @ w5
    b45 = b4 @ w5 + b5

    # Zero-pad output columns to a multiple of 128 for unmasked stores.
    pad = out_pad - w8.shape[1]
    w8p = jnp.pad(w8, ((0, 0), (0, pad)))
    b8p = jnp.pad(b8, ((0, 0), (0, pad)))

    flat = []
    for w, b in zip([w1, w2, w3, w45, w6, w7], [b1, b2, b3, b45, b6, b7]):
        flat += [w.astype(jnp.bfloat16), b.astype(act_dtype)]
    flat += [w8p.astype(jnp.bfloat16), b8p.astype(jnp.float32)]
    return flat


@functools.partial(jax.jit, static_argnames=("tile_b",))
def autoencoder_forward(x, params, *, tile_b=4096):
    """x: (B, start_dim) float32. params: flat list [w1,b1,...,w8,b8] with
    weights stored (in_dim, out_dim) and biases (1, out_dim)."""
    B, start_dim = x.shape
    out_pad = _round_up(start_dim, 128)
    out_dtype = jnp.bfloat16   # halve output HBM bytes; cast back at the end

    act_dtype = jnp.bfloat16 if _BF16_EPILOGUE else jnp.float32
    kparams = _prepare_kernel_params(params, out_pad, act_dtype)
    param_bytes = sum(int(p.size) * p.dtype.itemsize for p in kparams)

    # ---- batch tile selection ----
    # Ensure >= 2 grid steps when B allows it (both v7x TensorCores get work),
    # cap at tile_b, then shrink to fit the per-generation VMEM budget.
    tb = min(tile_b, _round_up(pl.cdiv(B, 2), 8))
    tb = max(tb, 8)

    def vmem_est(t):
        return (2 * t * start_dim * 4              # double-buffered x tile (f32)
                + 2 * t * out_pad * 2              # double-buffered out tile (bf16)
                + t * (start_dim + out_pad + 512) * 4   # live intermediates (generous)
                + 2 * param_bytes + (4 << 20))     # resident params + headroom

    budget = (_PHYS_VMEM * 3) // 4
    while tb > 256 and vmem_est(tb) > budget:
        tb = _round_up(tb // 2, 8)

    n_steps = pl.cdiv(B, tb)
    if n_steps > 1 and n_steps % 2 == 1:
        # prefer an even step count for clean 2-TensorCore balance on v7x
        tb = _round_up(pl.cdiv(B, n_steps + 1), 8)
        n_steps = pl.cdiv(B, tb)
    grid = (n_steps,)

    x_spec = pl.BlockSpec((tb, start_dim), lambda i: (i, 0))
    out_spec = pl.BlockSpec((tb, out_pad), lambda i: (i, 0))
    # Whole-array, constant-index blocks: params DMA'd once, VMEM-resident
    # across every batch grid step.
    param_specs = [pl.BlockSpec(p.shape, lambda i: (0, 0)) for p in kparams]

    flops_row = 2 * (start_dim * 128 + 128 * 64 + 64 * 16 + 16 * 16
                     + 16 * 64 + 64 * 128 + 128 * out_pad)
    cost = pl.CostEstimate(
        flops=int(B) * flops_row,
        transcendentals=int(B) * out_pad,
        bytes_accessed=int(B) * (start_dim * 4 + out_pad * 2) + param_bytes,
    )

    out = pl.pallas_call(
        functools.partial(_autoencoder_kernel, act_dtype),
        out_shape=jax.ShapeDtypeStruct((B, out_pad), out_dtype),
        grid=grid,
        in_specs=[x_spec] + param_specs,
        out_specs=out_spec,
        compiler_params=pltpu.CompilerParams(
            dimension_semantics=("parallel",),   # shard batch across TCs on v7x
            vmem_limit_bytes=int(budget),
        ),
        cost_estimate=cost,
    )(x, *kparams)

    # Drop the lane padding and restore the caller's dtype (f32).
    return out[:, :start_dim].astype(x.dtype)


def init_params(key, start_dim, reduced_dim):
    """Deterministic init matching PyTorch Linear shapes (stored as (in, out))."""
    dims = [
        (start_dim, 128), (128, 64), (64, 16), (16, reduced_dim),   # encoder
        (reduced_dim, 16), (16, 64), (64, 128), (128, start_dim),   # decoder
    ]
    params = []
    for i, (din, dout) in enumerate(dims):
        kw, kb = jax.random.split(jax.random.fold_in(key, i))
        bound = 1.0 / jnp.sqrt(jnp.float32(din))   # PyTorch default U(-1/sqrt(fan_in), .)
        w = jax.random.uniform(kw, (din, dout), jnp.float32, -bound, bound)
        b = jax.random.uniform(kb, (1, dout), jnp.float32, -bound, bound)
        params += [w, b]
    return params


def _reference_forward(x, params):
    """Pure-JAX f32 reference (unfused, matches the PyTorch module exactly)."""
    h = x
    for i in range(8):
        w, b = params[2 * i], params[2 * i + 1]
        h = h @ w + b
        if i in (0, 1, 2, 4, 5, 6):
            h = jnp.maximum(h, 0.0)
        elif i == 7:
            h = jax.nn.sigmoid(h)
    return h


if __name__ == "__main__":
    key = jax.random.PRNGKey(0)
    B, START_DIM, REDUCED_DIM = 8, 32, 4

    k_x, k_p, k_x2 = jax.random.split(key, 3)
    x = jax.random.normal(k_x, (B, START_DIM), jnp.float32)
    params = init_params(k_p, START_DIM, REDUCED_DIM)

    # Small-shape run (matches the module's toy usage).
    out = autoencoder_forward(x, params)
    out = jax.block_until_ready(out)
    ref = _reference_forward(x, params)
    assert out.shape == (B, START_DIM)
    # bf16 MXU operands / bf16 output + fused bottleneck -> compare against the
    # f32 reference with a bf16-appropriate tolerance (sigmoid outputs in [0,1]).
    assert jnp.allclose(out, ref, atol=5e-2, rtol=0.0), "mismatch vs reference (small)"

    # Multi-tile sanity run: exercises the batch grid (2 steps), the partial
    # last block masking, and the VMEM-resident weights.
    B2 = 2500
    x2 = jax.random.normal(k_x2, (B2, START_DIM), jnp.float32)
    out2 = jax.block_until_ready(autoencoder_forward(x2, params))
    ref2 = _reference_forward(x2, params)
    assert out2.shape == (B2, START_DIM)
    assert jnp.allclose(out2, ref2, atol=5e-2, rtol=0.0), "mismatch vs reference (tiled)"

    print("KERNEL_OK")
</pallas_src>

<mosaic_0001>
module attributes {stable_mosaic.version = 11 : i64} {
  func.func @_autoencoder_kernel(%arg0: i32, %arg1: memref<8x32xf32, #tpu.memory_space<vmem>>, %arg2: memref<32x128xbf16, #tpu.memory_space<vmem>>, %arg3: memref<1x128xf32, #tpu.memory_space<vmem>>, %arg4: memref<128x64xbf16, #tpu.memory_space<vmem>>, %arg5: memref<1x64xf32, #tpu.memory_space<vmem>>, %arg6: memref<64x16xbf16, #tpu.memory_space<vmem>>, %arg7: memref<1x16xf32, #tpu.memory_space<vmem>>, %arg8: memref<16x16xbf16, #tpu.memory_space<vmem>>, %arg9: memref<1x16xf32, #tpu.memory_space<vmem>>, %arg10: memref<16x64xbf16, #tpu.memory_space<vmem>>, %arg11: memref<1x64xf32, #tpu.memory_space<vmem>>, %arg12: memref<64x128xbf16, #tpu.memory_space<vmem>>, %arg13: memref<1x128xf32, #tpu.memory_space<vmem>>, %arg14: memref<128x128xbf16, #tpu.memory_space<vmem>>, %arg15: memref<1x128xf32, #tpu.memory_space<vmem>>, %arg16: memref<8x128xbf16, #tpu.memory_space<vmem>>) attributes {dimension_semantics = [#tpu.dimension_semantics<parallel>], iteration_bounds = array<i64: 1>, scalar_prefetch = 0 : i64, scratch_operands = 0 : i64, tpu.core_type = #tpu.core_type<tc>, window_params = [{transform_indices = @transform_0, window_bounds = array<i64: 8, 32>}, {pipeline_mode = #tpu.pipeline_mode<synchronous>, transform_indices = @transform_1, window_bounds = array<i64: 32, 128>}, {pipeline_mode = #tpu.pipeline_mode<synchronous>, transform_indices = @transform_2, window_bounds = array<i64: 1, 128>}, {pipeline_mode = #tpu.pipeline_mode<synchronous>, transform_indices = @transform_3, window_bounds = array<i64: 128, 64>}, {pipeline_mode = #tpu.pipeline_mode<synchronous>, transform_indices = @transform_4, window_bounds = array<i64: 1, 64>}, {pipeline_mode = #tpu.pipeline_mode<synchronous>, transform_indices = @transform_5, window_bounds = array<i64: 64, 16>}, {pipeline_mode = #tpu.pipeline_mode<synchronous>, transform_indices = @transform_6, window_bounds = array<i64: 1, 16>}, {pipeline_mode = #tpu.pipeline_mode<synchronous>, transform_indices = @transform_7, window_bounds = array<i64: 16, 16>}, {pipeline_mode = #tpu.pipeline_mode<synchronous>, transform_indices = @transform_8, window_bounds = array<i64: 1, 16>}, {pipeline_mode = #tpu.pipeline_mode<synchronous>, transform_indices = @transform_9, window_bounds = array<i64: 16, 64>}, {pipeline_mode = #tpu.pipeline_mode<synchronous>, transform_indices = @transform_10, window_bounds = array<i64: 1, 64>}, {pipeline_mode = #tpu.pipeline_mode<synchronous>, transform_indices = @transform_11, window_bounds = array<i64: 64, 128>}, {pipeline_mode = #tpu.pipeline_mode<synchronous>, transform_indices = @transform_12, window_bounds = array<i64: 1, 128>}, {pipeline_mode = #tpu.pipeline_mode<synchronous>, transform_indices = @transform_13, window_bounds = array<i64: 128, 128>}, {pipeline_mode = #tpu.pipeline_mode<synchronous>, transform_indices = @transform_14, window_bounds = array<i64: 1, 128>}, {transform_indices = @transform_15, window_bounds = array<i64: 8, 128>}]} {
    %c0 = arith.constant 0 : index
    %c0_0 = arith.constant 0 : index
    %0 = vector.load %arg1[%c0, %c0_0] : memref<8x32xf32, #tpu.memory_space<vmem>>, vector<8x32xf32>
    %1 = arith.truncf %0 : vector<8x32xf32> to vector<8x32xbf16>
    %c0_1 = arith.constant 0 : index
    %c0_2 = arith.constant 0 : index
    %2 = vector.load %arg2[%c0_1, %c0_2] : memref<32x128xbf16, #tpu.memory_space<vmem>>, vector<32x128xbf16>
    %cst = arith.constant dense<0.000000e+00> : vector<8x128xf32>
    %3 = tpu.matmul %1, %2, %cst {dimension_numbers = #tpu.dot_dimension_numbers<[1], [0], [0], [1], [0, 0, 1, 1], [], []>} : vector<8x32xbf16>, vector<32x128xbf16>, vector<8x128xf32> -> vector<8x128xf32>
    %c0_3 = arith.constant 0 : index
    %c0_4 = arith.constant 0 : index
    %4 = vector.load %arg3[%c0_3, %c0_4] : memref<1x128xf32, #tpu.memory_space<vmem>>, vector<1x128xf32>
    %5 = vector.broadcast %4 : vector<1x128xf32> to vector<8x128xf32>
    %6 = arith.addf %3, %5 : vector<8x128xf32>
    %cst_5 = arith.constant 0.000000e+00 : f32
    %7 = vector.broadcast %cst_5 : f32 to vector<8x128xf32>
    %8 = arith.maximumf %6, %7 : vector<8x128xf32>
    %9 = arith.truncf %8 : vector<8x128xf32> to vector<8x128xbf16>
    %c0_6 = arith.constant 0 : index
    %c0_7 = arith.constant 0 : index
    %10 = vector.load %arg4[%c0_6, %c0_7] : memref<128x64xbf16, #tpu.memory_space<vmem>>, vector<128x64xbf16>
    %cst_8 = arith.constant dense<0.000000e+00> : vector<8x64xf32>
    %11 = tpu.matmul %9, %10, %cst_8 {dimension_numbers = #tpu.dot_dimension_numbers<[1], [0], [0], [1], [0, 0, 1, 1], [], []>} : vector<8x128xbf16>, vector<128x64xbf16>, vector<8x64xf32> -> vector<8x64xf32>
    %c0_9 = arith.constant 0 : index
    %c0_10 = arith.constant 0 : index
    %12 = vector.load %arg5[%c0_9, %c0_10] : memref<1x64xf32, #tpu.memory_space<vmem>>, vector<1x64xf32>
    %13 = vector.broadcast %12 : vector<1x64xf32> to vector<8x64xf32>
    %14 = arith.addf %11, %13 : vector<8x64xf32>
    %cst_11 = arith.constant 0.000000e+00 : f32
    %15 = vector.broadcast %cst_11 : f32 to vector<8x64xf32>
    %16 = arith.maximumf %14, %15 : vector<8x64xf32>
    %17 = arith.truncf %16 : vector<8x64xf32> to vector<8x64xbf16>
    %c0_12 = arith.constant 0 : index
    %c0_13 = arith.constant 0 : index
    %18 = vector.load %arg6[%c0_12, %c0_13] : memref<64x16xbf16, #tpu.memory_space<vmem>>, vector<64x16xbf16>
    %cst_14 = arith.constant dense<0.000000e+00> : vector<8x16xf32>
    %19 = tpu.matmul %17, %18, %cst_14 {dimension_numbers = #tpu.dot_dimension_numbers<[1], [0], [0], [1], [0, 0, 1, 1], [], []>} : vector<8x64xbf16>, vector<64x16xbf16>, vector<8x16xf32> -> vector<8x16xf32>
    %c0_15 = arith.constant 0 : index
    %c0_16 = arith.constant 0 : index
    %20 = vector.load %arg7[%c0_15, %c0_16] : memref<1x16xf32, #tpu.memory_space<vmem>>, vector<1x16xf32>
    %21 = vector.broadcast %20 : vector<1x16xf32> to vector<8x16xf32>
    %22 = arith.addf %19, %21 : vector<8x16xf32>
    %cst_17 = arith.constant 0.000000e+00 : f32
    %23 = vector.broadcast %cst_17 : f32 to vector<8x16xf32>
    %24 = arith.maximumf %22, %23 : vector<8x16xf32>
    %25 = arith.truncf %24 : vector<8x16xf32> to vector<8x16xbf16>
    %c0_18 = arith.constant 0 : index
    %c0_19 = arith.constant 0 : index
    %26 = vector.load %arg8[%c0_18, %c0_19] : memref<16x16xbf16, #tpu.memory_space<vmem>>, vector<16x16xbf16>
    %cst_20 = arith.constant dense<0.000000e+00> : vector<8x16xf32>
    %27 = tpu.matmul %25, %26, %cst_20 {dimension_numbers = #tpu.dot_dimension_numbers<[1], [0], [0], [1], [0, 0, 1, 1], [], []>} : vector<8x16xbf16>, vector<16x16xbf16>, vector<8x16xf32> -> vector<8x16xf32>
    %c0_21 = arith.constant 0 : index
    %c0_22 = arith.constant 0 : index
    %28 = vector.load %arg9[%c0_21, %c0_22] : memref<1x16xf32, #tpu.memory_space<vmem>>, vector<1x16xf32>
    %29 = vector.broadcast %28 : vector<1x16xf32> to vector<8x16xf32>
    %30 = arith.addf %27, %29 : vector<8x16xf32>
    %cst_23 = arith.constant 0.000000e+00 : f32
    %31 = vector.broadcast %cst_23 : f32 to vector<8x16xf32>
    %32 = arith.maximumf %30, %31 : vector<8x16xf32>
    %33 = arith.truncf %32 : vector<8x16xf32> to vector<8x16xbf16>
    %c0_24 = arith.constant 0 : index
    %c0_25 = arith.constant 0 : index
    %34 = vector.load %arg10[%c0_24, %c0_25] : memref<16x64xbf16, #tpu.memory_space<vmem>>, vector<16x64xbf16>
    %cst_26 = arith.constant dense<0.000000e+00> : vector<8x64xf32>
    %35 = tpu.matmul %33, %34, %cst_26 {dimension_numbers = #tpu.dot_dimension_numbers<[1], [0], [0], [1], [0, 0, 1, 1], [], []>} : vector<8x16xbf16>, vector<16x64xbf16>, vector<8x64xf32> -> vector<8x64xf32>
    %c0_27 = arith.constant 0 : index
    %c0_28 = arith.constant 0 : index
    %36 = vector.load %arg11[%c0_27, %c0_28] : memref<1x64xf32, #tpu.memory_space<vmem>>, vector<1x64xf32>
    %37 = vector.broadcast %36 : vector<1x64xf32> to vector<8x64xf32>
    %38 = arith.addf %35, %37 : vector<8x64xf32>
    %cst_29 = arith.constant 0.000000e+00 : f32
    %39 = vector.broadcast %cst_29 : f32 to vector<8x64xf32>
    %40 = arith.maximumf %38, %39 : vector<8x64xf32>
    %41 = arith.truncf %40 : vector<8x64xf32> to vector<8x64xbf16>
    %c0_30 = arith.constant 0 : index
    %c0_31 = arith.constant 0 : index
    %42 = vector.load %arg12[%c0_30, %c0_31] : memref<64x128xbf16, #tpu.memory_space<vmem>>, vector<64x128xbf16>
    %cst_32 = arith.constant dense<0.000000e+00> : vector<8x128xf32>
    %43 = tpu.matmul %41, %42, %cst_32 {dimension_numbers = #tpu.dot_dimension_numbers<[1], [0], [0], [1], [0, 0, 1, 1], [], []>} : vector<8x64xbf16>, vector<64x128xbf16>, vector<8x128xf32> -> vector<8x128xf32>
    %c0_33 = arith.constant 0 : index
    %c0_34 = arith.constant 0 : index
    %44 = vector.load %arg13[%c0_33, %c0_34] : memref<1x128xf32, #tpu.memory_space<vmem>>, vector<1x128xf32>
    %45 = vector.broadcast %44 : vector<1x128xf32> to vector<8x128xf32>
    %46 = arith.addf %43, %45 : vector<8x128xf32>
    %cst_35 = arith.constant 0.000000e+00 : f32
    %47 = vector.broadcast %cst_35 : f32 to vector<8x128xf32>
    %48 = arith.maximumf %46, %47 : vector<8x128xf32>
    %49 = arith.truncf %48 : vector<8x128xf32> to vector<8x128xbf16>
    %c0_36 = arith.constant 0 : index
    %c0_37 = arith.constant 0 : index
    %50 = vector.load %arg14[%c0_36, %c0_37] : memref<128x128xbf16, #tpu.memory_space<vmem>>, vector<128x128xbf16>
    %cst_38 = arith.constant dense<0.000000e+00> : vector<8x128xf32>
    %51 = tpu.matmul %49, %50, %cst_38 {dimension_numbers = #tpu.dot_dimension_numbers<[1], [0], [0], [1], [0, 0, 1, 1], [], []>} : vector<8x128xbf16>, vector<128x128xbf16>, vector<8x128xf32> -> vector<8x128xf32>
    %c0_39 = arith.constant 0 : index
    %c0_40 = arith.constant 0 : index
    %52 = vector.load %arg15[%c0_39, %c0_40] : memref<1x128xf32, #tpu.memory_space<vmem>>, vector<1x128xf32>
    %53 = vector.broadcast %52 : vector<1x128xf32> to vector<8x128xf32>
    %54 = arith.addf %51, %53 : vector<8x128xf32>
    %cst_41 = arith.constant 5.000000e-01 : f32
    %55 = vector.broadcast %cst_41 : f32 to vector<8x128xf32>
    %56 = arith.mulf %55, %54 : vector<8x128xf32>
    %57 = math.tanh %56 : vector<8x128xf32>
    %cst_42 = arith.constant 5.000000e-01 : f32
    %58 = vector.broadcast %cst_42 : f32 to vector<8x128xf32>
    %59 = arith.mulf %58, %57 : vector<8x128xf32>
    %cst_43 = arith.constant 5.000000e-01 : f32
    %60 = vector.broadcast %cst_43 : f32 to vector<8x128xf32>
    %61 = arith.addf %59, %60 : vector<8x128xf32>
    %62 = arith.truncf %61 : vector<8x128xf32> to vector<8x128xbf16>
    %c0_44 = arith.constant 0 : index
    %c0_45 = arith.constant 0 : index
    %63 = vector.load %arg16[%c0_44, %c0_45] : memref<8x128xbf16, #tpu.memory_space<vmem>>, vector<8x128xbf16>
    tpu.vector_store %arg16[%c0_44, %c0_45], %62 {strides = array<i32>} : memref<8x128xbf16, #tpu.memory_space<vmem>>, vector<8x128xbf16>,
    return
  }
  func.func @transform_0(%arg0: i32) -> (i32, i32) {
    %c0_i32 = arith.constant 0 : i32
    %c0_i32_0 = arith.constant 0 : i32
    return %arg0, %c0_i32 : i32, i32
  }
  func.func @transform_1(%arg0: i32) -> (i32, i32) {
    %c0_i32 = arith.constant 0 : i32
    %c0_i32_0 = arith.constant 0 : i32
    %c0_i32_1 = arith.constant 0 : i32
    return %c0_i32, %c0_i32_0 : i32, i32
  }
  func.func @transform_2(%arg0: i32) -> (i32, i32) {
    %c0_i32 = arith.constant 0 : i32
    %c0_i32_0 = arith.constant 0 : i32
    %c0_i32_1 = arith.constant 0 : i32
    return %c0_i32, %c0_i32_0 : i32, i32
  }
  func.func @transform_3(%arg0: i32) -> (i32, i32) {
    %c0_i32 = arith.constant 0 : i32
    %c0_i32_0 = arith.constant 0 : i32
    %c0_i32_1 = arith.constant 0 : i32
    return %c0_i32, %c0_i32_0 : i32, i32
  }
  func.func @transform_4(%arg0: i32) -> (i32, i32) {
    %c0_i32 = arith.constant 0 : i32
    %c0_i32_0 = arith.constant 0 : i32
    %c0_i32_1 = arith.constant 0 : i32
    return %c0_i32, %c0_i32_0 : i32, i32
  }
  func.func @transform_5(%arg0: i32) -> (i32, i32) {
    %c0_i32 = arith.constant 0 : i32
    %c0_i32_0 = arith.constant 0 : i32
    %c0_i32_1 = arith.constant 0 : i32
    return %c0_i32, %c0_i32_0 : i32, i32
  }
  func.func @transform_6(%arg0: i32) -> (i32, i32) {
    %c0_i32 = arith.constant 0 : i32
    %c0_i32_0 = arith.constant 0 : i32
    %c0_i32_1 = arith.constant 0 : i32
    return %c0_i32, %c0_i32_0 : i32, i32
  }
  func.func @transform_7(%arg0: i32) -> (i32, i32) {
    %c0_i32 = arith.constant 0 : i32
    %c0_i32_0 = arith.constant 0 : i32
    %c0_i32_1 = arith.constant 0 : i32
    return %c0_i32, %c0_i32_0 : i32, i32
  }
  func.func @transform_8(%arg0: i32) -> (i32, i32) {
    %c0_i32 = arith.constant 0 : i32
    %c0_i32_0 = arith.constant 0 : i32
    %c0_i32_1 = arith.constant 0 : i32
    return %c0_i32, %c0_i32_0 : i32, i32
  }
  func.func @transform_9(%arg0: i32) -> (i32, i32) {
    %c0_i32 = arith.constant 0 : i32
    %c0_i32_0 = arith.constant 0 : i32
    %c0_i32_1 = arith.constant 0 : i32
    return %c0_i32, %c0_i32_0 : i32, i32
  }
  func.func @transform_10(%arg0: i32) -> (i32, i32) {
    %c0_i32 = arith.constant 0 : i32
    %c0_i32_0 = arith.constant 0 : i32
    %c0_i32_1 = arith.constant 0 : i32
    return %c0_i32, %c0_i32_0 : i32, i32
  }
  func.func @transform_11(%arg0: i32) -> (i32, i32) {
    %c0_i32 = arith.constant 0 : i32
    %c0_i32_0 = arith.constant 0 : i32
    %c0_i32_1 = arith.constant 0 : i32
    return %c0_i32, %c0_i32_0 : i32, i32
  }
  func.func @transform_12(%arg0: i32) -> (i32, i32) {
    %c0_i32 = arith.constant 0 : i32
    %c0_i32_0 = arith.constant 0 : i32
    %c0_i32_1 = arith.constant 0 : i32
    return %c0_i32, %c0_i32_0 : i32, i32
  }
  func.func @transform_13(%arg0: i32) -> (i32, i32) {
    %c0_i32 = arith.constant 0 : i32
    %c0_i32_0 = arith.constant 0 : i32
    %c0_i32_1 = arith.constant 0 : i32
    return %c0_i32, %c0_i32_0 : i32, i32
  }
  func.func @transform_14(%arg0: i32) -> (i32, i32) {
    %c0_i32 = arith.constant 0 : i32
    %c0_i32_0 = arith.constant 0 : i32
    %c0_i32_1 = arith.constant 0 : i32
    return %c0_i32, %c0_i32_0 : i32, i32
  }
  func.func @transform_15(%arg0: i32) -> (i32, i32) {
    %c0_i32 = arith.constant 0 : i32
    %c0_i32_0 = arith.constant 0 : i32
    return %arg0, %c0_i32 : i32, i32
  }
}

</mosaic_0001>

<llo_original>
// kernel: autoencoder_forward.1
$region0: #{autoencoder_forward.1}
  #allocation0 [shape = 'u32[]', space=smem, size = 0x4, offset = 0x4, fixed_abs, tag = 'smem constant byte address 0x4 - core index']
  #allocation1 [shape = 'u32[144,128]{1,0:T(1,128)}', space=vmem, size = 0x12000, scoped, tag = 'internal scratch']
  %s0 = inlined_call_operand.hbm [shape: f32[8,32], index: 0, kind: input, shape index: {}]
  %s1 = inlined_call_operand.hbm [shape: bf16[32,128], index: 1, kind: input, shape index: {}]
  %s2 = inlined_call_operand.hbm [shape: f32[1,128], index: 2, kind: input, shape index: {}]
  %s3 = inlined_call_operand.hbm [shape: bf16[128,64], index: 3, kind: input, shape index: {}]
  %s4 = inlined_call_operand.hbm [shape: f32[1,64], index: 4, kind: input, shape index: {}]
  %s5 = inlined_call_operand.hbm [shape: bf16[64,16], index: 5, kind: input, shape index: {}]
  %s6 = inlined_call_operand.hbm [shape: f32[1,16], index: 6, kind: input, shape index: {}]
  %s7 = inlined_call_operand.hbm [shape: bf16[16,16], index: 7, kind: input, shape index: {}]
  %s8 = inlined_call_operand.hbm [shape: f32[1,16], index: 8, kind: input, shape index: {}]
  %s9 = inlined_call_operand.hbm [shape: bf16[16,64], index: 9, kind: input, shape index: {}]
  %s10 = inlined_call_operand.hbm [shape: f32[1,64], index: 10, kind: input, shape index: {}]
  %s11 = inlined_call_operand.hbm [shape: bf16[64,128], index: 11, kind: input, shape index: {}]
  %s12 = inlined_call_operand.hbm [shape: f32[1,128], index: 12, kind: input, shape index: {}]
  %s13 = inlined_call_operand.hbm [shape: bf16[128,128], index: 13, kind: input, shape index: {}]
  %s14 = inlined_call_operand.hbm [shape: f32[1,128], index: 14, kind: input, shape index: {}]
  %s15 = inlined_call_operand.hbm [shape: bf16[8,128], index: 15, kind: output, shape index: {}]
  %s16 = sld [smem:[#allocation0]]
  $region130: #{autoencoder_forward.1} parent=0
    _
  %s18 = ssub.s32 1, %s16
  %s19 = scalar_select 0, %s18, %s16
  $region1: #{autoencoder_forward.1} parent=0
    #allocation2 [shape = 'u8[4096]{0}', space=vmem, size = 0x1000, scoped, tag = 'input window, operand 0, single buffered']
    #allocation3 [shape = 's32[1]{0}', space=sflag, size = 0x4, scoped, tag = 'scoped memory for autoencoder_forward.1']
    #allocation4 [shape = 's32[1]{0}', space=sflag, size = 0x4, scoped, tag = 'scoped memory for autoencoder_forward.1']
    #allocation5 [shape = 'u8[8192]{0}', space=vmem, size = 0x2000, scoped, tag = 'input window, operand 1, single buffered']
    #allocation6 [shape = 's32[1]{0}', space=sflag, size = 0x4, scoped, tag = 'scoped memory for autoencoder_forward.1']
    #allocation7 [shape = 'u8[512]{0}', space=vmem, size = 0x400, scoped, tag = 'input window, operand 2, single buffered']
    #allocation8 [shape = 'u8[32768]{0}', space=vmem, size = 0x8000, scoped, tag = 'input window, operand 3, single buffered']
    #allocation9 [shape = 's32[1]{0}', space=sflag, size = 0x4, scoped, tag = 'scoped memory for autoencoder_forward.1']
    #allocation10 [shape = 'u8[512]{0}', space=vmem, size = 0x400, scoped, tag = 'input window, operand 4, single buffered']
    #allocation11 [shape = 'u8[16384]{0}', space=vmem, size = 0x4000, scoped, tag = 'input window, operand 5, single buffered']
    #allocation12 [shape = 's32[1]{0}', space=sflag, size = 0x4, scoped, tag = 'scoped memory for autoencoder_forward.1']
    #allocation13 [shape = 'u8[512]{0}', space=vmem, size = 0x400, scoped, tag = 'input window, operand 6, single buffered']
    #allocation14 [shape = 'u8[4096]{0}', space=vmem, size = 0x1000, scoped, tag = 'input window, operand 7, single buffered']
    #allocation15 [shape = 's32[1]{0}', space=sflag, size = 0x4, scoped, tag = 'scoped memory for autoencoder_forward.1']
    #allocation16 [shape = 'u8[512]{0}', space=vmem, size = 0x400, scoped, tag = 'input window, operand 8, single buffered']
    #allocation17 [shape = 'u8[4096]{0}', space=vmem, size = 0x1000, scoped, tag = 'input window, operand 9, single buffered']
    #allocation18 [shape = 's32[1]{0}', space=sflag, size = 0x4, scoped, tag = 'scoped memory for autoencoder_forward.1']
    #allocation19 [shape = 'u8[512]{0}', space=vmem, size = 0x400, scoped, tag = 'input window, operand 10, single buffered']
    #allocation20 [shape = 'u8[16384]{0}', space=vmem, size = 0x4000, scoped, tag = 'input window, operand 11, single buffered']
    #allocation21 [shape = 's32[1]{0}', space=sflag, size = 0x4, scoped, tag = 'scoped memory for autoencoder_forward.1']
    #allocation22 [shape = 'u8[512]{0}', space=vmem, size = 0x400, scoped, tag = 'input window, operand 12, single buffered']
    #allocation23 [shape = 'u8[32768]{0}', space=vmem, size = 0x8000, scoped, tag = 'input window, operand 13, single buffered']
    #allocation24 [shape = 's32[1]{0}', space=sflag, size = 0x4, scoped, tag = 'scoped memory for autoencoder_forward.1']
    #allocation25 [shape = 'u8[512]{0}', space=vmem, size = 0x400, scoped, tag = 'input window, operand 14, single buffered']
    #allocation26 [shape = 'u8[2048]{0}', space=vmem, size = 0x800, scoped, tag = 'output window, operand 0, single buffered']
    %20 = vsyncpa [#allocation3], 0
    %21 = vsyncpa [#allocation6], 0
    %22 = vsyncpa [#allocation9], 0
    %23 = vsyncpa [#allocation12], 0
    %24 = vsyncpa [#allocation15], 0
    %25 = vsyncpa [#allocation18], 0
    %26 = vsyncpa [#allocation21], 0
    %27 = vsyncpa [#allocation24], 0
    %28 = vsyncpa [#allocation4], 0
    // Predicated region
    $region2: #{autoencoder_forward.1} parent=1 // pred_check
      _
    $region3: #{autoencoder_forward.1} parent=1 // pred_check_branch
      %30 = sbr.rel (0) target = $region5
    $region4: #{autoencoder_forward.1} parent=1 // pred_region
      %s32 = ssub.s32 128, 128
      %33 = vsyncadd [#allocation3], %s32
      %s35 = sshll.u32 [#allocation2], 4
      %s36 = int_to_ptr.vmem [resolvable:$true] %s35
      %38 = dma.hbm_to_vmem [thread:$0]  %s0, 128, %s36, [#allocation3]
    $region5: #{autoencoder_forward.1} parent=1 // pred_fallthru
      _
    // Predicated region
    $region6: #{autoencoder_forward.1} parent=1 // pred_check
      _
    $region7: #{autoencoder_forward.1} parent=1 // pred_check_branch
      %40 = sbr.rel (0) target = $region9
    $region8: #{autoencoder_forward.1} parent=1 // pred_region
      %s42 = ssub.s32 256, 256
      %43 = vsyncadd [#allocation6], %s42
      %s44 = sshll.u32 [#allocation5], 4
      %s45 = int_to_ptr.vmem [resolvable:$true] %s44
      %50 = dma.hbm_to_vmem [thread:$0]  %s1, 256, %s45, [#allocation6], 64, 64, 4
    $region9: #{autoencoder_forward.1} parent=1 // pred_fallthru
      _
    // Predicated region
    $region10: #{autoencoder_forward.1} parent=1 // pred_check
      _
    $region11: #{autoencoder_forward.1} parent=1 // pred_check_branch
      %52 = sbr.rel (0) target = $region13
    $region12: #{autoencoder_forward.1} parent=1 // pred_region
      %s54 = ssub.s32 16, 16
      %55 = vsyncadd [#allocation6], %s54
      %s57 = sshll.u32 [#allocation7], 4
      %s58 = int_to_ptr.vmem [resolvable:$true] %s57
      %60 = dma.hbm_to_vmem [thread:$0]  %s2, 16, %s58, [#allocation6]
    $region13: #{autoencoder_forward.1} parent=1 // pred_fallthru
      _
    // Predicated region
    $region14: #{autoencoder_forward.1} parent=1 // pred_check
      _
    $region15: #{autoencoder_forward.1} parent=1 // pred_check_branch
      %62 = sbr.rel (0) target = $region17
    $region16: #{autoencoder_forward.1} parent=1 // pred_region
      %s64 = ssub.s32 1024, 1024
      %65 = vsyncadd [#allocation9], %s64
      %s66 = sshll.u32 [#allocation8], 4
      %s67 = int_to_ptr.vmem [resolvable:$true] %s66
      %72 = dma.hbm_to_vmem [thread:$0]  %s3, 1024, %s67, [#allocation9], 64, 64, 4
    $region17: #{autoencoder_forward.1} parent=1 // pred_fallthru
      _
    // Predicated region
    $region18: #{autoencoder_forward.1} parent=1 // pred_check
      _
    $region19: #{autoencoder_forward.1} parent=1 // pred_check_branch
      %74 = sbr.rel (0) target = $region21
    $region20: #{autoencoder_forward.1} parent=1 // pred_region
      %s76 = ssub.s32 16, 16
      %77 = vsyncadd [#allocation9], %s76
      %s79 = sshll.u32 [#allocation10], 4
      %s80 = int_to_ptr.vmem [resolvable:$true] %s79
      %82 = dma.hbm_to_vmem [thread:$0]  %s4, 16, %s80, [#allocation9]
    $region21: #{autoencoder_forward.1} parent=1 // pred_fallthru
      _
    // Predicated region
    $region22: #{autoencoder_forward.1} parent=1 // pred_check
      _
    $region23: #{autoencoder_forward.1} parent=1 // pred_check_branch
      %84 = sbr.rel (0) target = $region25
    $region24: #{autoencoder_forward.1} parent=1 // pred_region
      %s86 = ssub.s32 512, 512
      %87 = vsyncadd [#allocation12], %s86
      %s88 = sshll.u32 [#allocation11], 4
      %s89 = int_to_ptr.vmem [resolvable:$true] %s88
      %94 = dma.hbm_to_vmem [thread:$0]  %s5, 512, %s89, [#allocation12], 64, 64, 4
    $region25: #{autoencoder_forward.1} parent=1 // pred_fallthru
      _
    // Predicated region
    $region26: #{autoencoder_forward.1} parent=1 // pred_check
      _
    $region27: #{autoencoder_forward.1} parent=1 // pred_check_branch
      %96 = sbr.rel (0) target = $region29
    $region28: #{autoencoder_forward.1} parent=1 // pred_region
      %s98 = ssub.s32 16, 16
      %99 = vsyncadd [#allocation12], %s98
      %s101 = sshll.u32 [#allocation13], 4
      %s102 = int_to_ptr.vmem [resolvable:$true] %s101
      %104 = dma.hbm_to_vmem [thread:$0]  %s6, 16, %s102, [#allocation12]
    $region29: #{autoencoder_forward.1} parent=1 // pred_fallthru
      _
    // Predicated region
    $region30: #{autoencoder_forward.1} parent=1 // pred_check
      _
    $region31: #{autoencoder_forward.1} parent=1 // pred_check_branch
      %106 = sbr.rel (0) target = $region33
    $region32: #{autoencoder_forward.1} parent=1 // pred_region
      %s108 = ssub.s32 128, 128
      %109 = vsyncadd [#allocation15], %s108
      %s110 = sshll.u32 [#allocation14], 4
      %s111 = int_to_ptr.vmem [resolvable:$true] %s110
      %116 = dma.hbm_to_vmem [thread:$0]  %s7, 128, %s111, [#allocation15], 64, 64, 4
    $region33: #{autoencoder_forward.1} parent=1 // pred_fallthru
      _
    // Predicated region
    $region34: #{autoencoder_forward.1} parent=1 // pred_check
      _
    $region35: #{autoencoder_forward.1} parent=1 // pred_check_branch
      %118 = sbr.rel (0) target = $region37
    $region36: #{autoencoder_forward.1} parent=1 // pred_region
      %s120 = ssub.s32 16, 16
      %121 = vsyncadd [#allocation15], %s120
      %s123 = sshll.u32 [#allocation16], 4
      %s124 = int_to_ptr.vmem [resolvable:$true] %s123
      %126 = dma.hbm_to_vmem [thread:$0]  %s8, 16, %s124, [#allocation15]
    $region37: #{autoencoder_forward.1} parent=1 // pred_fallthru
      _
    // Predicated region
    $region38: #{autoencoder_forward.1} parent=1 // pred_check
      _
    $region39: #{autoencoder_forward.1} parent=1 // pred_check_branch
      %128 = sbr.rel (0) target = $region41
    $region40: #{autoencoder_forward.1} parent=1 // pred_region
      %s130 = ssub.s32 128, 128
      %131 = vsyncadd [#allocation18], %s130
      %s132 = sshll.u32 [#allocation17], 4
      %s133 = int_to_ptr.vmem [resolvable:$true] %s132
      %138 = dma.hbm_to_vmem [thread:$0]  %s9, 128, %s133, [#allocation18], 64, 64, 4
    $region41: #{autoencoder_forward.1} parent=1 // pred_fallthru
      _
    // Predicated region
    $region42: #{autoencoder_forward.1} parent=1 // pred_check
      _
    $region43: #{autoencoder_forward.1} parent=1 // pred_check_branch
      %140 = sbr.rel (0) target = $region45
    $region44: #{autoencoder_forward.1} parent=1 // pred_region
      %s142 = ssub.s32 16, 16
      %143 = vsyncadd [#allocation18], %s142
      %s145 = sshll.u32 [#allocation19], 4
      %s146 = int_to_ptr.vmem [resolvable:$true] %s145
      %148 = dma.hbm_to_vmem [thread:$0]  %s10, 16, %s146, [#allocation18]
    $region45: #{autoencoder_forward.1} parent=1 // pred_fallthru
      _
    // Predicated region
    $region46: #{autoencoder_forward.1} parent=1 // pred_check
      _
    $region47: #{autoencoder_forward.1} parent=1 // pred_check_branch
      %150 = sbr.rel (0) target = $region49
    $region48: #{autoencoder_forward.1} parent=1 // pred_region
      %s152 = ssub.s32 512, 512
      %153 = vsyncadd [#allocation21], %s152
      %s154 = sshll.u32 [#allocation20], 4
      %s155 = int_to_ptr.vmem [resolvable:$true] %s154
      %160 = dma.hbm_to_vmem [thread:$0]  %s11, 512, %s155, [#allocation21], 64, 64, 4
    $region49: #{autoencoder_forward.1} parent=1 // pred_fallthru
      _
    // Predicated region
    $region50: #{autoencoder_forward.1} parent=1 // pred_check
      _
    $region51: #{autoencoder_forward.1} parent=1 // pred_check_branch
      %162 = sbr.rel (0) target = $region53
    $region52: #{autoencoder_forward.1} parent=1 // pred_region
      %s164 = ssub.s32 16, 16
      %165 = vsyncadd [#allocation21], %s164
      %s167 = sshll.u32 [#allocation22], 4
      %s168 = int_to_ptr.vmem [resolvable:$true] %s167
      %170 = dma.hbm_to_vmem [thread:$0]  %s12, 16, %s168, [#allocation21]
    $region53: #{autoencoder_forward.1} parent=1 // pred_fallthru
      _
    // Predicated region
    $region54: #{autoencoder_forward.1} parent=1 // pred_check
      _
    $region55: #{autoencoder_forward.1} parent=1 // pred_check_branch
      %172 = sbr.rel (0) target = $region57
    $region56: #{autoencoder_forward.1} parent=1 // pred_region
      %s174 = ssub.s32 1024, 1024
      %175 = vsyncadd [#allocation24], %s174
      %s176 = sshll.u32 [#allocation23], 4
      %s177 = int_to_ptr.vmem [resolvable:$true] %s176
      %182 = dma.hbm_to_vmem [thread:$0]  %s13, 1024, %s177, [#allocation24], 64, 64, 4
    $region57: #{autoencoder_forward.1} parent=1 // pred_fallthru
      _
    // Predicated region
    $region58: #{autoencoder_forward.1} parent=1 // pred_check
      _
    $region59: #{autoencoder_forward.1} parent=1 // pred_check_branch
      %184 = sbr.rel (0) target = $region61
    $region60: #{autoencoder_forward.1} parent=1 // pred_region
      %s186 = ssub.s32 16, 16
      %187 = vsyncadd [#allocation24], %s186
      %s189 = sshll.u32 [#allocation25], 4
      %s190 = int_to_ptr.vmem [resolvable:$true] %s189
      %192 = dma.hbm_to_vmem [thread:$0]  %s14, 16, %s190, [#allocation24]
    $region61: #{autoencoder_forward.1} parent=1 // pred_fallthru
      _
    // Predicated region
    $region62: #{autoencoder_forward.1} parent=1 // pred_check
      _
    $region63: #{autoencoder_forward.1} parent=1 // pred_check_branch
      %194 = sbr.rel (0) target = $region65
    $region64: #{autoencoder_forward.1} parent=1 // pred_region
      %195 = dma.done [#allocation3], 128
    $region65: #{autoencoder_forward.1} parent=1 // pred_fallthru
      _
    // Predicated region
    $region66: #{autoencoder_forward.1} parent=1 // pred_check
      _
    $region67: #{autoencoder_forward.1} parent=1 // pred_check_branch
      %197 = sbr.rel (0) target = $region69
    $region68: #{autoencoder_forward.1} parent=1 // pred_region
      %198 = dma.done [#allocation6], 256
    $region69: #{autoencoder_forward.1} parent=1 // pred_fallthru
      _
    // Predicated region
    $region70: #{autoencoder_forward.1} parent=1 // pred_check
      _
    $region71: #{autoencoder_forward.1} parent=1 // pred_check_branch
      %200 = sbr.rel (0) target = $region73
    $region72: #{autoencoder_forward.1} parent=1 // pred_region
      %201 = dma.done [#allocation6], 16
    $region73: #{autoencoder_forward.1} parent=1 // pred_fallthru
      _
    // Predicated region
    $region74: #{autoencoder_forward.1} parent=1 // pred_check
      _
    $region75: #{autoencoder_forward.1} parent=1 // pred_check_branch
      %203 = sbr.rel (0) target = $region77
    $region76: #{autoencoder_forward.1} parent=1 // pred_region
      %204 = dma.done [#allocation9], 1024
    $region77: #{autoencoder_forward.1} parent=1 // pred_fallthru
      _
    // Predicated region
    $region78: #{autoencoder_forward.1} parent=1 // pred_check
      _
    $region79: #{autoencoder_forward.1} parent=1 // pred_check_branch
      %206 = sbr.rel (0) target = $region81
    $region80: #{autoencoder_forward.1} parent=1 // pred_region
      %207 = dma.done [#allocation9], 16
    $region81: #{autoencoder_forward.1} parent=1 // pred_fallthru
      _
    // Predicated region
    $region82: #{autoencoder_forward.1} parent=1 // pred_check
      _
    $region83: #{autoencoder_forward.1} parent=1 // pred_check_branch
      %209 = sbr.rel (0) target = $region85
    $region84: #{autoencoder_forward.1} parent=1 // pred_region
      %210 = dma.done [#allocation12], 512
    $region85: #{autoencoder_forward.1} parent=1 // pred_fallthru
      _
    // Predicated region
    $region86: #{autoencoder_forward.1} parent=1 // pred_check
      _
    $region87: #{autoencoder_forward.1} parent=1 // pred_check_branch
      %212 = sbr.rel (0) target = $region89
    $region88: #{autoencoder_forward.1} parent=1 // pred_region
      %213 = dma.done [#allocation12], 16
    $region89: #{autoencoder_forward.1} parent=1 // pred_fallthru
      _
    // Predicated region
    $region90: #{autoencoder_forward.1} parent=1 // pred_check
      _
    $region91: #{autoencoder_forward.1} parent=1 // pred_check_branch
      %215 = sbr.rel (0) target = $region93
    $region92: #{autoencoder_forward.1} parent=1 // pred_region
      %216 = dma.done [#allocation15], 128
    $region93: #{autoencoder_forward.1} parent=1 // pred_fallthru
      _
    // Predicated region
    $region94: #{autoencoder_forward.1} parent=1 // pred_check
      _
    $region95: #{autoencoder_forward.1} parent=1 // pred_check_branch
      %218 = sbr.rel (0) target = $region97
    $region96: #{autoencoder_forward.1} parent=1 // pred_region
      %219 = dma.done [#allocation15], 16
    $region97: #{autoencoder_forward.1} parent=1 // pred_fallthru
      _
    // Predicated region
    $region98: #{autoencoder_forward.1} parent=1 // pred_check
      _
    $region99: #{autoencoder_forward.1} parent=1 // pred_check_branch
      %221 = sbr.rel (0) target = $region101
    $region100: #{autoencoder_forward.1} parent=1 // pred_region
      %222 = dma.done [#allocation18], 128
    $region101: #{autoencoder_forward.1} parent=1 // pred_fallthru
      _
    // Predicated region
    $region102: #{autoencoder_forward.1} parent=1 // pred_check
      _
    $region103: #{autoencoder_forward.1} parent=1 // pred_check_branch
      %224 = sbr.rel (0) target = $region105
    $region104: #{autoencoder_forward.1} parent=1 // pred_region
      %225 = dma.done [#allocation18], 16
    $region105: #{autoencoder_forward.1} parent=1 // pred_fallthru
      _
    // Predicated region
    $region106: #{autoencoder_forward.1} parent=1 // pred_check
      _
    $region107: #{autoencoder_forward.1} parent=1 // pred_check_branch
      %227 = sbr.rel (0) target = $region109
    $region108: #{autoencoder_forward.1} parent=1 // pred_region
      %228 = dma.done [#allocation21], 512
    $region109: #{autoencoder_forward.1} parent=1 // pred_fallthru
      _
    // Predicated region
    $region110: #{autoencoder_forward.1} parent=1 // pred_check
      _
    $region111: #{autoencoder_forward.1} parent=1 // pred_check_branch
      %230 = sbr.rel (0) target = $region113
    $region112: #{autoencoder_forward.1} parent=1 // pred_region
      %231 = dma.done [#allocation21], 16
    $region113: #{autoencoder_forward.1} parent=1 // pred_fallthru
      _
    // Predicated region
    $region114: #{autoencoder_forward.1} parent=1 // pred_check
      _
    $region115: #{autoencoder_forward.1} parent=1 // pred_check_branch
      %233 = sbr.rel (0) target = $region117
    $region116: #{autoencoder_forward.1} parent=1 // pred_region
      %234 = dma.done [#allocation24], 1024
    $region117: #{autoencoder_forward.1} parent=1 // pred_fallthru
      _
    // Predicated region
    $region118: #{autoencoder_forward.1} parent=1 // pred_check
      _
    $region119: #{autoencoder_forward.1} parent=1 // pred_check_branch
      %236 = sbr.rel (0) target = $region121
    $region120: #{autoencoder_forward.1} parent=1 // pred_region
      %237 = dma.done [#allocation24], 16
    $region121: #{autoencoder_forward.1} parent=1 // pred_fallthru
      _
    %v239 = vld [vmem:[#allocation2] sm:$0xff]
    %v240 = vpack.c.bf16 %v239, %v239
    %v241 = vld [vmem:[#allocation5] sm:$0xf]
    %v242 = vld [vmem:[#allocation5 + $0x4] sm:$0xf]
    %v243 = vld [vmem:[#allocation5 + $0x8] sm:$0xf]
    %v244 = vld [vmem:[#allocation5 + $0xc] sm:$0xf]
    %v245 = vld [vmem:[#allocation7] sm:$0x1]
    %v247 = vlaneseq
    %v248 = vshrl.u32 %v247, 7
    %v249 = vsub.s32 0, %v248
    %v250 = vrot.slane %v245, %v249
    %v256 = vunpack.c.l.b16 %v241
    %v257 = vunpack.c.l.b16 %v242
    %v258 = vunpack.c.l.b16 %v243
    %v259 = vunpack.c.l.b16 %v244
    %v260 = vpack.c.b16 %v257, %v256
    %v261 = vpack.c.b16 %v259, %v258
    %vm264 = vcmask 261120
    %v266 = vsel %vm264, %v240, 0
    %268 = vmatprep.subr.bf16.mxu0 0
    %269 = vmatpush1.bf16.msra.mxu0 %v260
    %270 = vmatprep.subr.bf16.mxu0 0
    %271 = vmatpush1.bf16.msra.mxu0 %v261
    %272 = vmatprep.subr.bf16.mxu0 0
    %273 = vmatpush1.bf16.msra.mxu0 0
    %274 = vmatprep.subr.bf16.mxu0 0
    %275 = vmatpush1.bf16.msra.mxu0 0
    %276 = vmatprep.subr.bf16.mxu0 0
    %277 = vmatpush1.bf16.msra.mxu0 0
    %278 = vmatprep.subr.bf16.mxu0 0
    %279 = vmatpush1.bf16.msra.mxu0 0
    %280 = vmatprep.subr.bf16.mxu0 0
    %281 = vmatpush1.bf16.msra.mxu0 0
    %282 = vmatprep.subr.bf16.mxu0 0
    %283 = vmatpush1.bf16.msra.mxu0 0
    %284 = vmatprep.subr.bf16.mxu0 0
    %285 = vmatpush1.bf16.msra.mxu0 0
    %286 = vmatprep.subr.bf16.mxu0 0
    %287 = vmatpush1.bf16.msra.mxu0 0
    %288 = vmatprep.subr.bf16.mxu0 0
    %289 = vmatpush1.bf16.msra.mxu0 0
    %290 = vmatprep.subr.bf16.mxu0 0
    %291 = vmatpush1.bf16.msra.mxu0 0
    %292 = vmatprep.subr.bf16.mxu0 0
    %293 = vmatpush1.bf16.msra.mxu0 0
    %294 = vmatprep.subr.bf16.mxu0 0
    %295 = vmatpush1.bf16.msra.mxu0 0
    %296 = vmatprep.subr.bf16.mxu0 0
    %297 = vmatpush1.bf16.msra.mxu0 0
    %298 = vmatprep.subr.bf16.mxu0 0
    %299 = vmatpush1.bf16.msra.mxu0 0
    %300 = vmatprep.mubr.bf16.mxu0 0
    %301 = vmatmul.mubr.bf16.gmra.mrb[0].mxu0 %v266
    %v302 = vpop.f32.mrb[0].mxu0
    %v303 = vadd.f32 %v250, %v302
    %v304 = vpop.f32.mrb[0].mxu0
    %v305 = vpop.f32.mrb[0].mxu0
    %v306 = vpop.f32.mrb[0].mxu0
    %307 = vdwg.mxu0
    %v308 = vmax.f32 %v303, 0.0
    %v309 = vpack.c.bf16 %v308, %v308
    %v310 = vld [vmem:[#allocation8] sm:$0xf]
    %v311 = vld [vmem:[#allocation8 + $0x4] sm:$0xf]
    %v312 = vld [vmem:[#allocation8 + $0x8] sm:$0xf]
    %v313 = vld [vmem:[#allocation8 + $0xc] sm:$0xf]
    %v314 = vld [vmem:[#allocation8 + $0x10] sm:$0xf]
    %v315 = vld [vmem:[#allocation8 + $0x14] sm:$0xf]
    %v316 = vld [vmem:[#allocation8 + $0x18] sm:$0xf]
    %v317 = vld [vmem:[#allocation8 + $0x1c] sm:$0xf]
    %v318 = vld [vmem:[#allocation8 + $0x20] sm:$0xf]
    %v319 = vld [vmem:[#allocation8 + $0x24] sm:$0xf]
    %v320 = vld [vmem:[#allocation8 + $0x28] sm:$0xf]
    %v321 = vld [vmem:[#allocation8 + $0x2c] sm:$0xf]
    %v322 = vld [vmem:[#allocation8 + $0x30] sm:$0xf]
    %v323 = vld [vmem:[#allocation8 + $0x34] sm:$0xf]
    %v324 = vld [vmem:[#allocation8 + $0x38] sm:$0xf]
    %v325 = vld [vmem:[#allocation8 + $0x3c] sm:$0xf]
    %v326 = vld [vmem:[#allocation10] sm:$0x1]
    %v328 = vlaneseq
    %v329 = vshrl.u32 %v328, 7
    %v330 = vsub.s32 0, %v329
    %v331 = vrot.slane %v326, %v330
    %v349 = vunpack.c.l.b16 %v310
    %v350 = vunpack.c.l.b16 %v311
    %v351 = vunpack.c.l.b16 %v312
    %v352 = vunpack.c.l.b16 %v313
    %v353 = vunpack.c.l.b16 %v314
    %v354 = vunpack.c.l.b16 %v315
    %v355 = vunpack.c.l.b16 %v316
    %v356 = vunpack.c.l.b16 %v317
    %v357 = vunpack.c.l.b16 %v318
    %v358 = vunpack.c.l.b16 %v319
    %v359 = vunpack.c.l.b16 %v320
    %v360 = vunpack.c.l.b16 %v321
    %v361 = vunpack.c.l.b16 %v322
    %v362 = vunpack.c.l.b16 %v323
    %v363 = vunpack.c.l.b16 %v324
    %v364 = vunpack.c.l.b16 %v325
    %v365 = vpack.c.b16 %v350, %v349
    %v366 = vpack.c.b16 %v352, %v351
    %v367 = vpack.c.b16 %v354, %v353
    %v368 = vpack.c.b16 %v356, %v355
    %v369 = vpack.c.b16 %v358, %v357
    %v370 = vpack.c.b16 %v360, %v359
    %v371 = vpack.c.b16 %v362, %v361
    %v372 = vpack.c.b16 %v364, %v363
    %381 = vmatprep.subr.bf16.mxu0 0
    %382 = vmatpush1.bf16.msra.mxu0 %v365
    %383 = vmatprep.subr.bf16.mxu0 0
    %384 = vmatpush1.bf16.msra.mxu0 %v366
    %385 = vmatprep.subr.bf16.mxu0 0
    %386 = vmatpush1.bf16.msra.mxu0 %v367
    %387 = vmatprep.subr.bf16.mxu0 0
    %388 = vmatpush1.bf16.msra.mxu0 %v368
    %389 = vmatprep.subr.bf16.mxu0 0
    %390 = vmatpush1.bf16.msra.mxu0 %v369
    %391 = vmatprep.subr.bf16.mxu0 0
    %392 = vmatpush1.bf16.msra.mxu0 %v370
    %393 = vmatprep.subr.bf16.mxu0 0
    %394 = vmatpush1.bf16.msra.mxu0 %v371
    %395 = vmatprep.subr.bf16.mxu0 0
    %396 = vmatpush1.bf16.msra.mxu0 %v372
    %397 = vmatprep.subr.bf16.mxu0 0
    %398 = vmatpush1.bf16.msra.mxu0 0
    %399 = vmatprep.subr.bf16.mxu0 0
    %400 = vmatpush1.bf16.msra.mxu0 0
    %401 = vmatprep.subr.bf16.mxu0 0
    %402 = vmatpush1.bf16.msra.mxu0 0
    %403 = vmatprep.subr.bf16.mxu0 0
    %404 = vmatpush1.bf16.msra.mxu0 0
    %405 = vmatprep.subr.bf16.mxu0 0
    %406 = vmatpush1.bf16.msra.mxu0 0
    %407 = vmatprep.subr.bf16.mxu0 0
    %408 = vmatpush1.bf16.msra.mxu0 0
    %409 = vmatprep.subr.bf16.mxu0 0
    %410 = vmatpush1.bf16.msra.mxu0 0
    %411 = vmatprep.subr.bf16.mxu0 0
    %412 = vmatpush1.bf16.msra.mxu0 0
    %413 = vmatprep.mubr.bf16.mxu0 0
    %414 = vmatmul.mubr.bf16.gmra.mrb[0].mxu0 %v309
    %v415 = vpop.f32.mrb[0].mxu0
    %v416 = vadd.f32 %v331, %v415
    %v417 = vpop.f32.mrb[0].mxu0
    %v418 = vpop.f32.mrb[0].mxu0
    %v419 = vpop.f32.mrb[0].mxu0
    %420 = vdwg.mxu0
    %v421 = vmax.f32 %v416, 0.0
    %v422 = vpack.c.bf16 %v421, %v421
    %v423 = vld [vmem:[#allocation11] sm:$0xf]
    %v424 = vld [vmem:[#allocation11 + $0x4] sm:$0xf]
    %v425 = vld [vmem:[#allocation11 + $0x8] sm:$0xf]
    %v426 = vld [vmem:[#allocation11 + $0xc] sm:$0xf]
    %v427 = vld [vmem:[#allocation11 + $0x10] sm:$0xf]
    %v428 = vld [vmem:[#allocation11 + $0x14] sm:$0xf]
    %v429 = vld [vmem:[#allocation11 + $0x18] sm:$0xf]
    %v430 = vld [vmem:[#allocation11 + $0x1c] sm:$0xf]
    %v431 = vld [vmem:[#allocation13] sm:$0x1]
    %v433 = vlaneseq
    %v434 = vshrl.u32 %v433, 7
    %v435 = vsub.s32 0, %v434
    %v436 = vrot.slane %v431, %v435
    %v446 = vunpack.c.l.b16 %v423
    %v447 = vunpack.c.l.b16 %v424
    %v448 = vunpack.c.l.b16 %v425
    %v449 = vunpack.c.l.b16 %v426
    %v450 = vunpack.c.l.b16 %v427
    %v451 = vunpack.c.l.b16 %v428
    %v452 = vunpack.c.l.b16 %v429
    %v453 = vunpack.c.l.b16 %v430
    %v454 = vpack.c.b16 %v447, %v446
    %v455 = vpack.c.b16 %v449, %v448
    %v456 = vpack.c.b16 %v451, %v450
    %v457 = vpack.c.b16 %v453, %v452
    %vm462 = vcmask 523264
    %v464 = vsel %vm462, %v422, 0
    %466 = vmatprep.subr.bf16.mxu0 0
    %467 = vmatpush1.bf16.msra.mxu0 %v454
    %468 = vmatprep.subr.bf16.mxu0 0
    %469 = vmatpush1.bf16.msra.mxu0 %v455
    %470 = vmatprep.subr.bf16.mxu0 0
    %471 = vmatpush1.bf16.msra.mxu0 %v456
    %472 = vmatprep.subr.bf16.mxu0 0
    %473 = vmatpush1.bf16.msra.mxu0 %v457
    %474 = vmatprep.subr.bf16.mxu0 0
    %475 = vmatpush1.bf16.msra.mxu0 0
    %476 = vmatprep.subr.bf16.mxu0 0
    %477 = vmatpush1.bf16.msra.mxu0 0
    %478 = vmatprep.subr.bf16.mxu0 0
    %479 = vmatpush1.bf16.msra.mxu0 0
    %480 = vmatprep.subr.bf16.mxu0 0
    %481 = vmatpush1.bf16.msra.mxu0 0
    %482 = vmatprep.subr.bf16.mxu0 0
    %483 = vmatpush1.bf16.msra.mxu0 0
    %484 = vmatprep.subr.bf16.mxu0 0
    %485 = vmatpush1.bf16.msra.mxu0 0
    %486 = vmatprep.subr.bf16.mxu0 0
    %487 = vmatpush1.bf16.msra.mxu0 0
    %488 = vmatprep.subr.bf16.mxu0 0
    %489 = vmatpush1.bf16.msra.mxu0 0
    %490 = vmatprep.subr.bf16.mxu0 0
    %491 = vmatpush1.bf16.msra.mxu0 0
    %492 = vmatprep.subr.bf16.mxu0 0
    %493 = vmatpush1.bf16.msra.mxu0 0
    %494 = vmatprep.subr.bf16.mxu0 0
    %495 = vmatpush1.bf16.msra.mxu0 0
    %496 = vmatprep.subr.bf16.mxu0 0
    %497 = vmatpush1.bf16.msra.mxu0 0
    %498 = vmatprep.mubr.bf16.mxu0 0
    %499 = vmatmul.mubr.bf16.gmra.mrb[0].mxu0 %v464
    %v500 = vpop.f32.mrb[0].mxu0
    %v501 = vadd.f32 %v436, %v500
    %v502 = vpop.f32.mrb[0].mxu0
    %v503 = vpop.f32.mrb[0].mxu0
    %v504 = vpop.f32.mrb[0].mxu0
    %505 = vdwg.mxu0
    %v506 = vmax.f32 %v501, 0.0
    %v507 = vpack.c.bf16 %v506, %v506
    %v508 = vld [vmem:[#allocation14] sm:$0xf]
    %v509 = vld [vmem:[#allocation14 + $0x4] sm:$0xf]
    %v510 = vld [vmem:[#allocation16] sm:$0x1]
    %v512 = vlaneseq
    %v513 = vshrl.u32 %v512, 7
    %v514 = vsub.s32 0, %v513
    %v515 = vrot.slane %v510, %v514
    %v519 = vunpack.c.l.b16 %v508
    %v520 = vunpack.c.l.b16 %v509
    %v521 = vpack.c.b16 %v520, %v519
    %vm523 = vcmask 130048
    %v525 = vsel %vm523, %v507, 0
    %527 = vmatprep.subr.bf16.mxu0 0
    %528 = vmatpush1.bf16.msra.mxu0 %v521
    %529 = vmatprep.subr.bf16.mxu0 0
    %530 = vmatpush1.bf16.msra.mxu0 0
    %531 = vmatprep.subr.bf16.mxu0 0
    %532 = vmatpush1.bf16.msra.mxu0 0
    %533 = vmatprep.subr.bf16.mxu0 0
    %534 = vmatpush1.bf16.msra.mxu0 0
    %535 = vmatprep.subr.bf16.mxu0 0
    %536 = vmatpush1.bf16.msra.mxu0 0
    %537 = vmatprep.subr.bf16.mxu0 0
    %538 = vmatpush1.bf16.msra.mxu0 0
    %539 = vmatprep.subr.bf16.mxu0 0
    %540 = vmatpush1.bf16.msra.mxu0 0
    %541 = vmatprep.subr.bf16.mxu0 0
    %542 = vmatpush1.bf16.msra.mxu0 0
    %543 = vmatprep.subr.bf16.mxu0 0
    %544 = vmatpush1.bf16.msra.mxu0 0
    %545 = vmatprep.subr.bf16.mxu0 0
    %546 = vmatpush1.bf16.msra.mxu0 0
    %547 = vmatprep.subr.bf16.mxu0 0
    %548 = vmatpush1.bf16.msra.mxu0 0
    %549 = vmatprep.subr.bf16.mxu0 0
    %550 = vmatpush1.bf16.msra.mxu0 0
    %551 = vmatprep.subr.bf16.mxu0 0
    %552 = vmatpush1.bf16.msra.mxu0 0
    %553 = vmatprep.subr.bf16.mxu0 0
    %554 = vmatpush1.bf16.msra.mxu0 0
    %555 = vmatprep.subr.bf16.mxu0 0
    %556 = vmatpush1.bf16.msra.mxu0 0
    %557 = vmatprep.subr.bf16.mxu0 0
    %558 = vmatpush1.bf16.msra.mxu0 0
    %559 = vmatprep.mubr.bf16.mxu0 0
    %560 = vmatmul.mubr.bf16.gmra.mrb[0].mxu0 %v525
    %v561 = vpop.f32.mrb[0].mxu0
    %v562 = vadd.f32 %v515, %v561
    %v563 = vpop.f32.mrb[0].mxu0
    %v564 = vpop.f32.mrb[0].mxu0
    %v565 = vpop.f32.mrb[0].mxu0
    %566 = vdwg.mxu0
    %v567 = vmax.f32 %v562, 0.0
    %v568 = vpack.c.bf16 %v567, %v567
    %v569 = vld [vmem:[#allocation17] sm:$0xf]
    %v570 = vld [vmem:[#allocation17 + $0x4] sm:$0xf]
    %v571 = vld [vmem:[#allocation19] sm:$0x1]
    %v573 = vlaneseq
    %v574 = vshrl.u32 %v573, 7
    %v575 = vsub.s32 0, %v574
    %v576 = vrot.slane %v571, %v575
    %v580 = vunpack.c.l.b16 %v569
    %v581 = vunpack.c.l.b16 %v570
    %v582 = vpack.c.b16 %v581, %v580
    %v585 = vsel %vm523, %v568, 0
    %587 = vmatprep.subr.bf16.mxu0 0
    %588 = vmatpush1.bf16.msra.mxu0 %v582
    %589 = vmatprep.subr.bf16.mxu0 0
    %590 = vmatpush1.bf16.msra.mxu0 0
    %591 = vmatprep.subr.bf16.mxu0 0
    %592 = vmatpush1.bf16.msra.mxu0 0
    %593 = vmatprep.subr.bf16.mxu0 0
    %594 = vmatpush1.bf16.msra.mxu0 0
    %595 = vmatprep.subr.bf16.mxu0 0
    %596 = vmatpush1.bf16.msra.mxu0 0
    %597 = vmatprep.subr.bf16.mxu0 0
    %598 = vmatpush1.bf16.msra.mxu0 0
    %599 = vmatprep.subr.bf16.mxu0 0
    %600 = vmatpush1.bf16.msra.mxu0 0
    %601 = vmatprep.subr.bf16.mxu0 0
    %602 = vmatpush1.bf16.msra.mxu0 0
    %603 = vmatprep.subr.bf16.mxu0 0
    %604 = vmatpush1.bf16.msra.mxu0 0
    %605 = vmatprep.subr.bf16.mxu0 0
    %606 = vmatpush1.bf16.msra.mxu0 0
    %607 = vmatprep.subr.bf16.mxu0 0
    %608 = vmatpush1.bf16.msra.mxu0 0
    %609 = vmatprep.subr.bf16.mxu0 0
    %610 = vmatpush1.bf16.msra.mxu0 0
    %611 = vmatprep.subr.bf16.mxu0 0
    %612 = vmatpush1.bf16.msra.mxu0 0
    %613 = vmatprep.subr.bf16.mxu0 0
    %614 = vmatpush1.bf16.msra.mxu0 0
    %615 = vmatprep.subr.bf16.mxu0 0
    %616 = vmatpush1.bf16.msra.mxu0 0
    %617 = vmatprep.subr.bf16.mxu0 0
    %618 = vmatpush1.bf16.msra.mxu0 0
    %619 = vmatprep.mubr.bf16.mxu0 0
    %620 = vmatmul.mubr.bf16.gmra.mrb[0].mxu0 %v585
    %v621 = vpop.f32.mrb[0].mxu0
    %v622 = vadd.f32 %v576, %v621
    %v623 = vpop.f32.mrb[0].mxu0
    %v624 = vpop.f32.mrb[0].mxu0
    %v625 = vpop.f32.mrb[0].mxu0
    %626 = vdwg.mxu0
    %v627 = vmax.f32 %v622, 0.0
    %v628 = vpack.c.bf16 %v627, %v627
    %v629 = vld [vmem:[#allocation20] sm:$0xf]
    %v630 = vld [vmem:[#allocation20 + $0x4] sm:$0xf]
    %v631 = vld [vmem:[#allocation20 + $0x8] sm:$0xf]
    %v632 = vld [vmem:[#allocation20 + $0xc] sm:$0xf]
    %v633 = vld [vmem:[#allocation20 + $0x10] sm:$0xf]
    %v634 = vld [vmem:[#allocation20 + $0x14] sm:$0xf]
    %v635 = vld [vmem:[#allocation20 + $0x18] sm:$0xf]
    %v636 = vld [vmem:[#allocation20 + $0x1c] sm:$0xf]
    %v637 = vld [vmem:[#allocation22] sm:$0x1]
    %v639 = vlaneseq
    %v640 = vshrl.u32 %v639, 7
    %v641 = vsub.s32 0, %v640
    %v642 = vrot.slane %v637, %v641
    %v652 = vunpack.c.l.b16 %v629
    %v653 = vunpack.c.l.b16 %v630
    %v654 = vunpack.c.l.b16 %v631
    %v655 = vunpack.c.l.b16 %v632
    %v656 = vunpack.c.l.b16 %v633
    %v657 = vunpack.c.l.b16 %v634
    %v658 = vunpack.c.l.b16 %v635
    %v659 = vunpack.c.l.b16 %v636
    %v660 = vpack.c.b16 %v653, %v652
    %v661 = vpack.c.b16 %v655, %v654
    %v662 = vpack.c.b16 %v657, %v656
    %v663 = vpack.c.b16 %v659, %v658
    %v669 = vsel %vm462, %v628, 0
    %671 = vmatprep.subr.bf16.mxu0 0
    %672 = vmatpush1.bf16.msra.mxu0 %v660
    %673 = vmatprep.subr.bf16.mxu0 0
    %674 = vmatpush1.bf16.msra.mxu0 %v661
    %675 = vmatprep.subr.bf16.mxu0 0
    %676 = vmatpush1.bf16.msra.mxu0 %v662
    %677 = vmatprep.subr.bf16.mxu0 0
    %678 = vmatpush1.bf16.msra.mxu0 %v663
    %679 = vmatprep.subr.bf16.mxu0 0
    %680 = vmatpush1.bf16.msra.mxu0 0
    %681 = vmatprep.subr.bf16.mxu0 0
    %682 = vmatpush1.bf16.msra.mxu0 0
    %683 = vmatprep.subr.bf16.mxu0 0
    %684 = vmatpush1.bf16.msra.mxu0 0
    %685 = vmatprep.subr.bf16.mxu0 0
    %686 = vmatpush1.bf16.msra.mxu0 0
    %687 = vmatprep.subr.bf16.mxu0 0
    %688 = vmatpush1.bf16.msra.mxu0 0
    %689 = vmatprep.subr.bf16.mxu0 0
    %690 = vmatpush1.bf16.msra.mxu0 0
    %691 = vmatprep.subr.bf16.mxu0 0
    %692 = vmatpush1.bf16.msra.mxu0 0
    %693 = vmatprep.subr.bf16.mxu0 0
    %694 = vmatpush1.bf16.msra.mxu0 0
    %695 = vmatprep.subr.bf16.mxu0 0
    %696 = vmatpush1.bf16.msra.mxu0 0
    %697 = vmatprep.subr.bf16.mxu0 0
    %698 = vmatpush1.bf16.msra.mxu0 0
    %699 = vmatprep.subr.bf16.mxu0 0
    %700 = vmatpush1.bf16.msra.mxu0 0
    %701 = vmatprep.subr.bf16.mxu0 0
    %702 = vmatpush1.bf16.msra.mxu0 0
    %703 = vmatprep.mubr.bf16.mxu0 0
    %704 = vmatmul.mubr.bf16.gmra.mrb[0].mxu0 %v669
    %v705 = vpop.f32.mrb[0].mxu0
    %v706 = vadd.f32 %v642, %v705
    %v707 = vpop.f32.mrb[0].mxu0
    %v708 = vpop.f32.mrb[0].mxu0
    %v709 = vpop.f32.mrb[0].mxu0
    %710 = vdwg.mxu0
    %v711 = vmax.f32 %v706, 0.0
    %v712 = vpack.c.bf16 %v711, %v711
    %v713 = vld [vmem:[#allocation23] sm:$0xf]
    %v714 = vld [vmem:[#allocation23 + $0x4] sm:$0xf]
    %v715 = vld [vmem:[#allocation23 + $0x8] sm:$0xf]
    %v716 = vld [vmem:[#allocation23 + $0xc] sm:$0xf]
    %v717 = vld [vmem:[#allocation23 + $0x10] sm:$0xf]
    %v718 = vld [vmem:[#allocation23 + $0x14] sm:$0xf]
    %v719 = vld [vmem:[#allocation23 + $0x18] sm:$0xf]
    %v720 = vld [vmem:[#allocation23 + $0x1c] sm:$0xf]
    %v721 = vld [vmem:[#allocation23 + $0x20] sm:$0xf]
    %v722 = vld [vmem:[#allocation23 + $0x24] sm:$0xf]
    %v723 = vld [vmem:[#allocation23 + $0x28] sm:$0xf]
    %v724 = vld [vmem:[#allocation23 + $0x2c] sm:$0xf]
    %v725 = vld [vmem:[#allocation23 + $0x30] sm:$0xf]
    %v726 = vld [vmem:[#allocation23 + $0x34] sm:$0xf]
    %v727 = vld [vmem:[#allocation23 + $0x38] sm:$0xf]
    %v728 = vld [vmem:[#allocation23 + $0x3c] sm:$0xf]
    %v729 = vld [vmem:[#allocation25] sm:$0x1]
    %v731 = vlaneseq
    %v732 = vshrl.u32 %v731, 7
    %v733 = vsub.s32 0, %v732
    %v734 = vrot.slane %v729, %v733
    %v752 = vunpack.c.l.b16 %v713
    %v753 = vunpack.c.l.b16 %v714
    %v754 = vunpack.c.l.b16 %v715
    %v755 = vunpack.c.l.b16 %v716
    %v756 = vunpack.c.l.b16 %v717
    %v757 = vunpack.c.l.b16 %v718
    %v758 = vunpack.c.l.b16 %v719
    %v759 = vunpack.c.l.b16 %v720
    %v760 = vunpack.c.l.b16 %v721
    %v761 = vunpack.c.l.b16 %v722
    %v762 = vunpack.c.l.b16 %v723
    %v763 = vunpack.c.l.b16 %v724
    %v764 = vunpack.c.l.b16 %v725
    %v765 = vunpack.c.l.b16 %v726
    %v766 = vunpack.c.l.b16 %v727
    %v767 = vunpack.c.l.b16 %v728
    %v768 = vpack.c.b16 %v753, %v752
    %v769 = vpack.c.b16 %v755, %v754
    %v770 = vpack.c.b16 %v757, %v756
    %v771 = vpack.c.b16 %v759, %v758
    %v772 = vpack.c.b16 %v761, %v760
    %v773 = vpack.c.b16 %v763, %v762
    %v774 = vpack.c.b16 %v765, %v764
    %v775 = vpack.c.b16 %v767, %v766
    %784 = vmatprep.subr.bf16.mxu0 0
    %785 = vmatpush1.bf16.msra.mxu0 %v768
    %786 = vmatprep.subr.bf16.mxu0 0
    %787 = vmatpush1.bf16.msra.mxu0 %v769
    %788 = vmatprep.subr.bf16.mxu0 0
    %789 = vmatpush1.bf16.msra.mxu0 %v770
    %790 = vmatprep.subr.bf16.mxu0 0
    %791 = vmatpush1.bf16.msra.mxu0 %v771
    %792 = vmatprep.subr.bf16.mxu0 0
    %793 = vmatpush1.bf16.msra.mxu0 %v772
    %794 = vmatprep.subr.bf16.mxu0 0
    %795 = vmatpush1.bf16.msra.mxu0 %v773
    %796 = vmatprep.subr.bf16.mxu0 0
    %797 = vmatpush1.bf16.msra.mxu0 %v774
    %798 = vmatprep.subr.bf16.mxu0 0
    %799 = vmatpush1.bf16.msra.mxu0 %v775
    %800 = vmatprep.subr.bf16.mxu0 0
    %801 = vmatpush1.bf16.msra.mxu0 0
    %802 = vmatprep.subr.bf16.mxu0 0
    %803 = vmatpush1.bf16.msra.mxu0 0
    %804 = vmatprep.subr.bf16.mxu0 0
    %805 = vmatpush1.bf16.msra.mxu0 0
    %806 = vmatprep.subr.bf16.mxu0 0
    %807 = vmatpush1.bf16.msra.mxu0 0
    %808 = vmatprep.subr.bf16.mxu0 0
    %809 = vmatpush1.bf16.msra.mxu0 0
    %810 = vmatprep.subr.bf16.mxu0 0
    %811 = vmatpush1.bf16.msra.mxu0 0
    %812 = vmatprep.subr.bf16.mxu0 0
    %813 = vmatpush1.bf16.msra.mxu0 0
    %814 = vmatprep.subr.bf16.mxu0 0
    %815 = vmatpush1.bf16.msra.mxu0 0
    %816 = vmatprep.mubr.bf16.mxu0 0
    %817 = vmatmul.mubr.bf16.gmra.mrb[0].mxu0 %v712
    %v818 = vpop.f32.mrb[0].mxu0
    %v819 = vadd.f32 %v734, %v818
    %v820 = vpop.f32.mrb[0].mxu0
    %v821 = vpop.f32.mrb[0].mxu0
    %v822 = vpop.f32.mrb[0].mxu0
    %823 = vdwg.mxu0
    %v824 = vmul.f32 %v819, 0.5
    %v825 = vtanh.pop %v824
    %v826 = vmul.f32 %v825, 0.5
    %v827 = vadd.f32 %v826, 0.5
    %v828 = vpack.c.bf16 %v827, %v827
    %829 = vst [vmem:[#allocation26] sm:$0xf] %v828
    // Predicated region
    $region122: #{autoencoder_forward.1} parent=1 // pred_check
      _
    $region123: #{autoencoder_forward.1} parent=1 // pred_check_branch
      %831 = sbr.rel (0) target = $region125
    $region124: #{autoencoder_forward.1} parent=1 // pred_region
      %s833 = ssub.s32 64, 64
      %834 = vsyncadd [#allocation4], %s833
      %s836 = sshll.u32 [#allocation26], 4
      %s837 = int_to_ptr.vmem [resolvable:$true] %s836
      %839 = dma.vmem_to_hbm [thread:$0]  %s837, 64, %s15, [#allocation4]
    $region125: #{autoencoder_forward.1} parent=1 // pred_fallthru
      _
    // Predicated region
    $region126: #{autoencoder_forward.1} parent=1 // pred_check
      _
    $region127: #{autoencoder_forward.1} parent=1 // pred_check_branch
      %841 = sbr.rel (0) target = $region129
    $region128: #{autoencoder_forward.1} parent=1 // pred_region
      %842 = dma.done [#allocation4], 64
    $region129: #{autoencoder_forward.1} parent=1 // pred_fallthru
      _
    %843 = vsyncpa [#allocation3], 1
    %844 = vsyncpa [#allocation6], 1
    %845 = vsyncpa [#allocation9], 1
    %846 = vsyncpa [#allocation12], 1
    %847 = vsyncpa [#allocation15], 1
    %848 = vsyncpa [#allocation18], 1
    %849 = vsyncpa [#allocation21], 1
    %850 = vsyncpa [#allocation24], 1
    %851 = vsyncpa [#allocation4], 1

</llo_original>
